<compile_context>
chip_gen: v6e
topology: v6e:2x2x1
jax: 0.10.0
libtpu: 0.0.40
codegen_flags: <defaults>
</compile_context>

<pallas_src>
import math

import jax
import jax.numpy as jnp
from jax.experimental import pallas as pl
from jax.experimental.pallas import tpu as pltpu


OUT_PAD = 128   # lane-dense output width (action dim padded up to one lane tile)


def _round_up(x, m):
    return ((x + m - 1) // m) * m


def _actor_kernel_factory(in_pad, hidden, out_pad, max_action):
    # Static row offsets into the packed weight buffer.  All are multiples of
    # 16 (in_pad is rounded up to 16, hidden asserted % 16 == 0), so every
    # static slice is bf16 sublane-tile aligned.
    o1 = 0
    o2 = in_pad
    o3 = in_pad + hidden
    o4 = in_pad + 2 * hidden

    def actor_kernel(x_ref, w_ref, b_ref, out_ref):
        x = x_ref[...]                         # (tile_b, in_pad) bf16
        b = b_ref[...]                         # (4, hidden) f32

        h = jnp.dot(x, w_ref[o1:o2, :], preferred_element_type=jnp.float32)
        h = jnp.maximum(h + b[0:1, :], 0.0)

        h = jnp.dot(h.astype(jnp.bfloat16), w_ref[o2:o3, :],
                    preferred_element_type=jnp.float32)
        h = jnp.maximum(h + b[1:2, :], 0.0)

        h = jnp.dot(h.astype(jnp.bfloat16), w_ref[o3:o4, :],
                    preferred_element_type=jnp.float32)
        h = jnp.maximum(h + b[2:3, :], 0.0)

        # Last layer: only the first `out_pad` (=128) columns of the packed w4
        # block are populated; the :out_pad column slice is lane-tile aligned.
        a = jnp.dot(h.astype(jnp.bfloat16), w_ref[o4:o4 + hidden, :out_pad],
                    preferred_element_type=jnp.float32)
        a = a + b[3:4, :out_pad]               # padded lanes of w4/b4 are zero
        a = jnp.tanh(a)                        # padded lanes: tanh(0) = 0
        if max_action != 1.0:                  # skip the multiply when a no-op
            a = max_action * a
        out_ref[...] = a                       # full-lane (tile_b, 128) store

    return actor_kernel


def pack_actor_params(params):
    """One-time packing of the 4 Linear layers.  Call at parameter init, not
    per forward call."""
    w1, b1, w2, b2, w3, b3, w4, b4 = params            # weights stored (in, out)
    in_dim, hidden = w1.shape
    act_dim = w4.shape[1]
    assert hidden % 16 == 0, "hidden must be a multiple of 16 for packed-row alignment"
    assert act_dim <= OUT_PAD, "action dim must fit in one 128-lane tile"

    in_pad = _round_up(in_dim, 16)                     # K of first matmul, tile aligned

    w1_p = jnp.zeros((in_pad, hidden), jnp.float32).at[:in_dim, :].set(w1)
    # w4 lives in the same 256-wide buffer but only columns [:OUT_PAD] are used
    # by the kernel (columns [:act_dim] non-zero, rest zero).
    w4_p = jnp.zeros((hidden, hidden), jnp.float32).at[:, :act_dim].set(w4)
    w_packed = jnp.concatenate([w1_p, w2, w3, w4_p], axis=0).astype(jnp.bfloat16)

    b_packed = (jnp.zeros((4, hidden), jnp.float32)
                .at[0, :].set(b1)
                .at[1, :].set(b2)
                .at[2, :].set(b3)
                .at[3, :act_dim].set(b4))

    meta = dict(in_dim=in_dim, in_pad=in_pad, hidden=hidden,
                act_dim=act_dim, out_pad=OUT_PAD)
    return w_packed, b_packed, meta


def _choose_tiling(B, batch_tile):
    B_pad = _round_up(B, 16)
    if B_pad >= 32:
        # Guarantee at least 2 grid steps so the "parallel" axis can feed both
        # TensorCores on v7x; cap at batch_tile for large batches.
        half = _round_up((B_pad + 1) // 2, 16)
        tile_b = min(batch_tile, half)
    else:
        tile_b = B_pad
    B_pad = _round_up(B_pad, tile_b)
    return B_pad, tile_b


def actor_forward(x, w_packed, b_packed, meta, max_action, *, batch_tile=512):
    """x: (B, obs+goal) float32. Returns (B, action) float32."""
    B, in_dim = x.shape
    assert in_dim == meta["in_dim"]
    in_pad = meta["in_pad"]
    hidden = meta["hidden"]
    act_dim = meta["act_dim"]
    out_pad = meta["out_pad"]

    B_pad, tile_b = _choose_tiling(B, batch_tile)
    grid = (B_pad // tile_b,)

    # Only the activations are padded per call; weights are pre-packed.
    x_p = jnp.zeros((B_pad, in_pad), jnp.bfloat16).at[:B, :in_dim].set(
        x.astype(jnp.bfloat16))

    # ---- cost hint so XLA can overlap surrounding HLO --------------------
    flops = 2 * B_pad * (in_pad * hidden + 2 * hidden * hidden + hidden * out_pad)
    bytes_accessed = (x_p.size * 2 + w_packed.size * 2 + b_packed.size * 4
                      + B_pad * out_pad * 4)
    cost = pl.CostEstimate(flops=flops,
                           transcendentals=B_pad * out_pad,
                           bytes_accessed=bytes_accessed)

    kernel = _actor_kernel_factory(in_pad, hidden, out_pad, float(max_action))
    out = pl.pallas_call(
        kernel,
        out_shape=jax.ShapeDtypeStruct((B_pad, out_pad), jnp.float32),
        grid=grid,
        in_specs=[
            pl.BlockSpec((tile_b, in_pad), lambda i: (i, 0)),
            pl.BlockSpec(w_packed.shape, lambda i: (0, 0)),   # resident across grid
            pl.BlockSpec(b_packed.shape, lambda i: (0, 0)),   # resident across grid
        ],
        out_specs=pl.BlockSpec((tile_b, out_pad), lambda i: (i, 0)),
        compiler_params=pltpu.CompilerParams(
            dimension_semantics=("parallel",)),
        cost_estimate=cost,
    )(x_p, w_packed, b_packed)
    return out[:B, :act_dim]


def init_linear(key, fan_in, fan_out):
    """PyTorch nn.Linear default init: U(-1/sqrt(fan_in), 1/sqrt(fan_in))."""
    kw, kb = jax.random.split(key)
    bound = 1.0 / math.sqrt(fan_in)
    # Stored as (in, out) so the kernel computes x @ W directly.
    w = jax.random.uniform(kw, (fan_in, fan_out), jnp.float32, -bound, bound)
    b = jax.random.uniform(kb, (fan_out,), jnp.float32, -bound, bound)
    return w, b


def reference_forward_f32(x, params, max_action):
    """Exact f32 math, matching the PyTorch module."""
    w1, b1, w2, b2, w3, b3, w4, b4 = params
    h = jnp.maximum(x @ w1 + b1, 0.0)
    h = jnp.maximum(h @ w2 + b2, 0.0)
    h = jnp.maximum(h @ w3 + b3, 0.0)
    return max_action * jnp.tanh(h @ w4 + b4)


def reference_forward_bf16(x, params, max_action):
    """Same precision recipe as the kernel (bf16 MXU operands, f32 accumulate)."""
    w1, b1, w2, b2, w3, b3, w4, b4 = params
    bf = jnp.bfloat16
    h = jnp.dot(x.astype(bf), w1.astype(bf), preferred_element_type=jnp.float32)
    h = jnp.maximum(h + b1, 0.0)
    h = jnp.dot(h.astype(bf), w2.astype(bf), preferred_element_type=jnp.float32)
    h = jnp.maximum(h + b2, 0.0)
    h = jnp.dot(h.astype(bf), w3.astype(bf), preferred_element_type=jnp.float32)
    h = jnp.maximum(h + b3, 0.0)
    a = jnp.dot(h.astype(bf), w4.astype(bf), preferred_element_type=jnp.float32) + b4
    return max_action * jnp.tanh(a)


if __name__ == "__main__":
    env_params = {"obs": 10, "goal": 5, "action": 4, "action_max": 1.0}
    batch = 2
    in_dim = env_params["obs"] + env_params["goal"]
    hidden = 256
    act_dim = env_params["action"]
    max_action = env_params["action_max"]

    key = jax.random.PRNGKey(0)
    k_x, k1, k2, k3, k4 = jax.random.split(key, 5)

    x = jax.random.normal(k_x, (batch, in_dim), jnp.float32)

    w1, b1 = init_linear(k1, in_dim, hidden)
    w2, b2 = init_linear(k2, hidden, hidden)
    w3, b3 = init_linear(k3, hidden, hidden)
    w4, b4 = init_linear(k4, hidden, act_dim)
    params = (w1, b1, w2, b2, w3, b3, w4, b4)

    # One-time packing (done at parameter init, not per forward call).
    w_packed, b_packed, meta = pack_actor_params(params)
    w_packed, b_packed = jax.block_until_ready((w_packed, b_packed))

    out = actor_forward(x, w_packed, b_packed, meta, max_action)
    out = jax.block_until_ready(out)
    assert out.shape == (batch, act_dim)

    ref_bf16 = reference_forward_bf16(x, params, max_action)   # same precision recipe
    ref_f32 = reference_forward_f32(x, params, max_action)     # PyTorch f32 semantics
    assert jnp.allclose(out, ref_bf16, atol=1e-4, rtol=1e-4), "mismatch vs bf16 reference"
    assert jnp.allclose(out, ref_f32, atol=5e-2, rtol=5e-2), "mismatch vs f32 reference"

    # Also exercise a multi-tile batch (>=2 grid steps path).
    xb = jax.random.normal(jax.random.PRNGKey(1), (300, in_dim), jnp.float32)
    outb = jax.block_until_ready(actor_forward(xb, w_packed, b_packed, meta, max_action))
    refb = reference_forward_bf16(xb, params, max_action)
    assert outb.shape == (300, act_dim)
    assert jnp.allclose(outb, refb, atol=1e-4, rtol=1e-4), "mismatch on multi-tile batch"

    print("KERNEL_OK")
</pallas_src>

<mosaic_0001>
module attributes {stable_mosaic.version = 11 : i64} {
  func.func @actor_kernel(%arg0: i32, %arg1: memref<16x16xbf16, #tpu.memory_space<vmem>>, %arg2: memref<784x256xbf16, #tpu.memory_space<vmem>>, %arg3: memref<4x256xf32, #tpu.memory_space<vmem>>, %arg4: memref<16x128xf32, #tpu.memory_space<vmem>>) attributes {dimension_semantics = [#tpu.dimension_semantics<parallel>], iteration_bounds = array<i64: 1>, scalar_prefetch = 0 : i64, scratch_operands = 0 : i64, tpu.core_type = #tpu.core_type<tc>, window_params = [{transform_indices = @transform_0, window_bounds = array<i64: 16, 16>}, {pipeline_mode = #tpu.pipeline_mode<synchronous>, transform_indices = @transform_1, window_bounds = array<i64: 784, 256>}, {pipeline_mode = #tpu.pipeline_mode<synchronous>, transform_indices = @transform_2, window_bounds = array<i64: 4, 256>}, {transform_indices = @transform_3, window_bounds = array<i64: 16, 128>}]} {
    %c0 = arith.constant 0 : index
    %c0_0 = arith.constant 0 : index
    %0 = vector.load %arg1[%c0, %c0_0] : memref<16x16xbf16, #tpu.memory_space<vmem>>, vector<16x16xbf16>
    %c0_1 = arith.constant 0 : index
    %c0_2 = arith.constant 0 : index
    %1 = vector.load %arg3[%c0_1, %c0_2] : memref<4x256xf32, #tpu.memory_space<vmem>>, vector<4x256xf32>
    %c0_3 = arith.constant 0 : index
    %c0_4 = arith.constant 0 : index
    %2 = vector.load %arg2[%c0_3, %c0_4] : memref<784x256xbf16, #tpu.memory_space<vmem>>, vector<16x256xbf16>
    %cst = arith.constant dense<0.000000e+00> : vector<16x256xf32>
    %3 = tpu.matmul %0, %2, %cst {dimension_numbers = #tpu.dot_dimension_numbers<[1], [0], [0], [1], [0, 0, 1, 1], [], []>} : vector<16x16xbf16>, vector<16x256xbf16>, vector<16x256xf32> -> vector<16x256xf32>
    %4 = vector.extract_strided_slice %1 {offsets = [0, 0], sizes = [1, 256], strides = [1, 1]} : vector<4x256xf32> to vector<1x256xf32>
    %5 = vector.broadcast %4 : vector<1x256xf32> to vector<16x256xf32>
    %6 = arith.addf %3, %5 : vector<16x256xf32>
    %cst_5 = arith.constant 0.000000e+00 : f32
    %7 = vector.broadcast %cst_5 : f32 to vector<16x256xf32>
    %8 = arith.maximumf %6, %7 : vector<16x256xf32>
    %9 = arith.truncf %8 : vector<16x256xf32> to vector<16x256xbf16>
    %c16 = arith.constant 16 : index
    %c0_6 = arith.constant 0 : index
    %10 = vector.load %arg2[%c16, %c0_6] : memref<784x256xbf16, #tpu.memory_space<vmem>>, vector<256x256xbf16>
    %cst_7 = arith.constant dense<0.000000e+00> : vector<16x256xf32>
    %11 = tpu.matmul %9, %10, %cst_7 {dimension_numbers = #tpu.dot_dimension_numbers<[1], [0], [0], [1], [0, 0, 1, 1], [], []>} : vector<16x256xbf16>, vector<256x256xbf16>, vector<16x256xf32> -> vector<16x256xf32>
    %12 = vector.extract_strided_slice %1 {offsets = [1, 0], sizes = [1, 256], strides = [1, 1]} : vector<4x256xf32> to vector<1x256xf32>
    %13 = vector.broadcast %12 : vector<1x256xf32> to vector<16x256xf32>
    %14 = arith.addf %11, %13 : vector<16x256xf32>
    %cst_8 = arith.constant 0.000000e+00 : f32
    %15 = vector.broadcast %cst_8 : f32 to vector<16x256xf32>
    %16 = arith.maximumf %14, %15 : vector<16x256xf32>
    %17 = arith.truncf %16 : vector<16x256xf32> to vector<16x256xbf16>
    %c272 = arith.constant 272 : index
    %c0_9 = arith.constant 0 : index
    %18 = vector.load %arg2[%c272, %c0_9] : memref<784x256xbf16, #tpu.memory_space<vmem>>, vector<256x256xbf16>
    %cst_10 = arith.constant dense<0.000000e+00> : vector<16x256xf32>
    %19 = tpu.matmul %17, %18, %cst_10 {dimension_numbers = #tpu.dot_dimension_numbers<[1], [0], [0], [1], [0, 0, 1, 1], [], []>} : vector<16x256xbf16>, vector<256x256xbf16>, vector<16x256xf32> -> vector<16x256xf32>
    %20 = vector.extract_strided_slice %1 {offsets = [2, 0], sizes = [1, 256], strides = [1, 1]} : vector<4x256xf32> to vector<1x256xf32>
    %21 = vector.broadcast %20 : vector<1x256xf32> to vector<16x256xf32>
    %22 = arith.addf %19, %21 : vector<16x256xf32>
    %cst_11 = arith.constant 0.000000e+00 : f32
    %23 = vector.broadcast %cst_11 : f32 to vector<16x256xf32>
    %24 = arith.maximumf %22, %23 : vector<16x256xf32>
    %25 = arith.truncf %24 : vector<16x256xf32> to vector<16x256xbf16>
    %c528 = arith.constant 528 : index
    %c0_12 = arith.constant 0 : index
    %26 = vector.load %arg2[%c528, %c0_12] : memref<784x256xbf16, #tpu.memory_space<vmem>>, vector<256x128xbf16>
    %cst_13 = arith.constant dense<0.000000e+00> : vector<16x128xf32>
    %27 = tpu.matmul %25, %26, %cst_13 {dimension_numbers = #tpu.dot_dimension_numbers<[1], [0], [0], [1], [0, 0, 1, 1], [], []>} : vector<16x256xbf16>, vector<256x128xbf16>, vector<16x128xf32> -> vector<16x128xf32>
    %28 = vector.extract_strided_slice %1 {offsets = [3, 0], sizes = [1, 128], strides = [1, 1]} : vector<4x256xf32> to vector<1x128xf32>
    %29 = vector.broadcast %28 : vector<1x128xf32> to vector<16x128xf32>
    %30 = arith.addf %27, %29 : vector<16x128xf32>
    %31 = math.tanh %30 : vector<16x128xf32>
    %c0_14 = arith.constant 0 : index
    %c0_15 = arith.constant 0 : index
    %32 = vector.load %arg4[%c0_14, %c0_15] : memref<16x128xf32, #tpu.memory_space<vmem>>, vector<16x128xf32>
    tpu.vector_store %arg4[%c0_14, %c0_15], %31 {strides = array<i32>} : memref<16x128xf32, #tpu.memory_space<vmem>>, vector<16x128xf32>,
    return
  }
  func.func @transform_0(%arg0: i32) -> (i32, i32) {
    %c0_i32 = arith.constant 0 : i32
    %c0_i32_0 = arith.constant 0 : i32
    return %arg0, %c0_i32 : i32, i32
  }
  func.func @transform_1(%arg0: i32) -> (i32, i32) {
    %c0_i32 = arith.constant 0 : i32
    %c0_i32_0 = arith.constant 0 : i32
    %c0_i32_1 = arith.constant 0 : i32
    return %c0_i32, %c0_i32_0 : i32, i32
  }
  func.func @transform_2(%arg0: i32) -> (i32, i32) {
    %c0_i32 = arith.constant 0 : i32
    %c0_i32_0 = arith.constant 0 : i32
    %c0_i32_1 = arith.constant 0 : i32
    return %c0_i32, %c0_i32_0 : i32, i32
  }
  func.func @transform_3(%arg0: i32) -> (i32, i32) {
    %c0_i32 = arith.constant 0 : i32
    %c0_i32_0 = arith.constant 0 : i32
    return %arg0, %c0_i32 : i32, i32
  }
}

</mosaic_0001>

<llo_original>
// kernel: tpu_custom_call.1
$region0: #{tpu_custom_call.1}
  #allocation0 [shape = 'u32[]', space=smem, size = 0x4, offset = 0x4, fixed_abs, tag = 'smem constant byte address 0x4 - core index']
  #allocation1 [shape = 'u32[144,128]{1,0:T(1,128)}', space=vmem, size = 0x12000, scoped, tag = 'internal scratch']
  %s0 = inlined_call_operand.hbm [shape: bf16[16,16], index: 0, kind: input, shape index: {}]
  %s1 = inlined_call_operand.hbm [shape: bf16[784,256], index: 1, kind: input, shape index: {}]
  %s2 = inlined_call_operand.hbm [shape: f32[4,256], index: 2, kind: input, shape index: {}]
  %s3 = inlined_call_operand.hbm [shape: f32[16,128], index: 3, kind: output, shape index: {}]
  %s4 = sld [smem:[#allocation0]]
  $region34: #{tpu_custom_call.1} parent=0
    _
  %s6 = ssub.s32 1, %s4
  %s7 = scalar_select 0, %s6, %s4
  $region1: #{tpu_custom_call.1} parent=0
    #allocation2 [shape = 'u8[4096]{0}', space=vmem, size = 0x1000, scoped, tag = 'input window, operand 0, single buffered']
    #allocation3 [shape = 's32[1]{0}', space=sflag, size = 0x4, scoped, tag = 'scoped memory for tpu_custom_call.1']
    #allocation4 [shape = 's32[1]{0}', space=sflag, size = 0x4, scoped, tag = 'scoped memory for tpu_custom_call.1']
    #allocation5 [shape = 'u8[401408]{0}', space=vmem, size = 0x62000, scoped, tag = 'input window, operand 1, single buffered']
    #allocation6 [shape = 's32[1]{0}', space=sflag, size = 0x4, scoped, tag = 'scoped memory for tpu_custom_call.1']
    #allocation7 [shape = 'u8[4096]{0}', space=vmem, size = 0x1000, scoped, tag = 'input window, operand 2, single buffered']
    #allocation8 [shape = 'u8[8192]{0}', space=vmem, size = 0x2000, scoped, tag = 'output window, operand 0, single buffered']
    %8 = vsyncpa [#allocation3], 0
    %9 = vsyncpa [#allocation6], 0
    %10 = vsyncpa [#allocation4], 0
    // Predicated region
    $region2: #{tpu_custom_call.1} parent=1 // pred_check
      _
    $region3: #{tpu_custom_call.1} parent=1 // pred_check_branch
      %12 = sbr.rel (0) target = $region5
    $region4: #{tpu_custom_call.1} parent=1 // pred_region
      %s14 = ssub.s32 128, 128
      %15 = vsyncadd [#allocation3], %s14
      %s16 = sshll.u32 [#allocation2], 4
      %s17 = int_to_ptr.vmem [resolvable:$true] %s16
      %22 = dma.hbm_to_vmem [thread:$0]  %s0, 128, %s17, [#allocation3], 64, 64, 4
    $region5: #{tpu_custom_call.1} parent=1 // pred_fallthru
      _
    // Predicated region
    $region6: #{tpu_custom_call.1} parent=1 // pred_check
      _
    $region7: #{tpu_custom_call.1} parent=1 // pred_check_branch
      %24 = sbr.rel (0) target = $region9
    $region8: #{tpu_custom_call.1} parent=1 // pred_region
      %s26 = ssub.s32 12544, 12544
      %27 = vsyncadd [#allocation6], %s26
      %s28 = sshll.u32 [#allocation5], 4
      %s29 = int_to_ptr.vmem [resolvable:$true] %s28
      %34 = dma.hbm_to_vmem [thread:$0]  %s1, 12544, %s29, [#allocation6], 128, 128, 8
    $region9: #{tpu_custom_call.1} parent=1 // pred_fallthru
      _
    // Predicated region
    $region10: #{tpu_custom_call.1} parent=1 // pred_check
      _
    $region11: #{tpu_custom_call.1} parent=1 // pred_check_branch
      %36 = sbr.rel (0) target = $region13
    $region12: #{tpu_custom_call.1} parent=1 // pred_region
      %s38 = ssub.s32 128, 128
      %39 = vsyncadd [#allocation6], %s38
      %s41 = sshll.u32 [#allocation7], 4
      %s42 = int_to_ptr.vmem [resolvable:$true] %s41
      %44 = dma.hbm_to_vmem [thread:$0]  %s2, 128, %s42, [#allocation6]
    $region13: #{tpu_custom_call.1} parent=1 // pred_fallthru
      _
    // Predicated region
    $region14: #{tpu_custom_call.1} parent=1 // pred_check
      _
    $region15: #{tpu_custom_call.1} parent=1 // pred_check_branch
      %46 = sbr.rel (0) target = $region17
    $region16: #{tpu_custom_call.1} parent=1 // pred_region
      %47 = dma.done [#allocation3], 128
    $region17: #{tpu_custom_call.1} parent=1 // pred_fallthru
      _
    // Predicated region
    $region18: #{tpu_custom_call.1} parent=1 // pred_check
      _
    $region19: #{tpu_custom_call.1} parent=1 // pred_check_branch
      %49 = sbr.rel (0) target = $region21
    $region20: #{tpu_custom_call.1} parent=1 // pred_region
      %50 = dma.done [#allocation6], 12544
    $region21: #{tpu_custom_call.1} parent=1 // pred_fallthru
      _
    // Predicated region
    $region22: #{tpu_custom_call.1} parent=1 // pred_check
      _
    $region23: #{tpu_custom_call.1} parent=1 // pred_check_branch
      %52 = sbr.rel (0) target = $region25
    $region24: #{tpu_custom_call.1} parent=1 // pred_region
      %53 = dma.done [#allocation6], 128
    $region25: #{tpu_custom_call.1} parent=1 // pred_fallthru
      _
    %v55 = vld [vmem:[#allocation2] sm:$0xf]
    %v56 = vld [vmem:[#allocation2 + $0x4] sm:$0xf]
    %v57 = vld [vmem:[#allocation7] sm:$0xff]
    %v58 = vld [vmem:[#allocation5] sm:$0xff]
    %v59 = vld [vmem:[#allocation5 + $0x8] sm:$0xff]
    %v61 = vlaneseq
    %v62 = vshrl.u32 %v61, 7
    %v63 = vsub.s32 0, %v62
    %v64 = vrot.slane %v57, %v63
    %v65 = vlaneseq
    %v66 = vshrl.u32 %v65, 7
    %v67 = vsub.s32 4, %v66
    %v68 = vrot.slane %v57, %v67
    %v71 = vlaneseq
    %v72 = vshrl.u32 %v71, 7
    %v73 = vsub.s32 0, %v72
    %v74 = vrot.slane %v64, %v73
    %v75 = vlaneseq
    %v76 = vshrl.u32 %v75, 7
    %v77 = vsub.s32 0, %v76
    %v78 = vrot.slane %v68, %v77
    %v81 = vunpack.c.l.b16 %v55
    %v82 = vunpack.c.l.b16 %v56
    %v83 = vpack.c.b16 %v82, %v81
    %v86 = vunpack.c.l.b16 %v58
    %v87 = vunpack.c.h.b16 %v58
    %v88 = vunpack.c.l.b16 %v59
    %v89 = vunpack.c.h.b16 %v59
    %v90 = vpack.c.b16 %v88, %v86
    %v91 = vpack.c.b16 %v89, %v87
    %vm94 = vcmask 130048
    %v96 = vsel %vm94, %v83, 0
    %98 = vmatprep.subr.bf16.mxu0 0
    %99 = vmatpush1.bf16.msra.mxu0 0
    %100 = vmatprep.subr.bf16.mxu0 0
    %101 = vmatpush1.bf16.msra.mxu0 0
    %102 = vmatprep.subr.bf16.mxu0 0
    %103 = vmatpush1.bf16.msra.mxu0 0
    %104 = vmatprep.subr.bf16.mxu0 0
    %105 = vmatpush1.bf16.msra.mxu0 0
    %106 = vmatprep.subr.bf16.mxu0 0
    %107 = vmatpush1.bf16.msra.mxu0 0
    %108 = vmatprep.subr.bf16.mxu0 0
    %109 = vmatpush1.bf16.msra.mxu0 0
    %110 = vmatprep.subr.bf16.mxu0 0
    %111 = vmatpush1.bf16.msra.mxu0 0
    %112 = vmatprep.subr.bf16.mxu0 %v91
    %113 = vmatpush1.bf16.msra.mxu0 %v90
    %114 = vmatprep.subr.bf16.mxu0 0
    %115 = vmatpush2.bf16.msra.mxu0 0
    %116 = vmatprep.subr.bf16.mxu0 0
    %117 = vmatpush2.bf16.msra.mxu0 0
    %118 = vmatprep.subr.bf16.mxu0 0
    %119 = vmatpush2.bf16.msra.mxu0 0
    %120 = vmatprep.subr.bf16.mxu0 0
    %121 = vmatpush2.bf16.msra.mxu0 0
    %122 = vmatprep.subr.bf16.mxu0 0
    %123 = vmatpush2.bf16.msra.mxu0 0
    %124 = vmatprep.subr.bf16.mxu0 0
    %125 = vmatpush2.bf16.msra.mxu0 0
    %126 = vmatprep.subr.bf16.mxu0 0
    %127 = vmatpush2.bf16.msra.mxu0 0
    %128 = vmatprep.subr.bf16.mxu0 0
    %129 = vmatpush2.bf16.msra.mxu0 0
    %130 = vmatprep.mubr.bf16.mxu0 0
    %131 = vmatmul.mubr.bf16.gmra.mxu0 %v96
    %v132 = vpop.f32.mrf.mxu0
    %v133 = vadd.f32 %v74, %v132
    %v134 = vpop.f32.mrf.mxu0
    %v135 = vadd.f32 %v78, %v134
    %v136 = vpop.f32.mrf.mxu0
    %v137 = vadd.f32 %v74, %v136
    %v138 = vpop.f32.mrf.mxu0
    %v139 = vadd.f32 %v78, %v138
    %140 = vdwg.mxu0
    %v141 = vmax.f32 %v133, 0.0
    %v142 = vmax.f32 %v135, 0.0
    %v143 = vmax.f32 %v137, 0.0
    %v144 = vmax.f32 %v139, 0.0
    %v145 = vpack.c.bf16 %v143, %v141
    %v146 = vpack.c.bf16 %v144, %v142
    %v147 = vld [vmem:[#allocation5 + $0x10] sm:$0xff]
    %v148 = vld [vmem:[#allocation5 + $0x18] sm:$0xff]
    %v149 = vld [vmem:[#allocation5 + $0x20] sm:$0xff]
    %v150 = vld [vmem:[#allocation5 + $0x28] sm:$0xff]
    %v151 = vld [vmem:[#allocation5 + $0x30] sm:$0xff]
    %v152 = vld [vmem:[#allocation5 + $0x38] sm:$0xff]
    %v153 = vld [vmem:[#allocation5 + $0x40] sm:$0xff]
    %v154 = vld [vmem:[#allocation5 + $0x48] sm:$0xff]
    %v155 = vld [vmem:[#allocation5 + $0x50] sm:$0xff]
    %v156 = vld [vmem:[#allocation5 + $0x58] sm:$0xff]
    %v157 = vld [vmem:[#allocation5 + $0x60] sm:$0xff]
    %v158 = vld [vmem:[#allocation5 + $0x68] sm:$0xff]
    %v159 = vld [vmem:[#allocation5 + $0x70] sm:$0xff]
    %v160 = vld [vmem:[#allocation5 + $0x78] sm:$0xff]
    %v161 = vld [vmem:[#allocation5 + $0x80] sm:$0xff]
    %v162 = vld [vmem:[#allocation5 + $0x88] sm:$0xff]
    %v163 = vld [vmem:[#allocation5 + $0x90] sm:$0xff]
    %v164 = vld [vmem:[#allocation5 + $0x98] sm:$0xff]
    %v165 = vld [vmem:[#allocation5 + $0xa0] sm:$0xff]
    %v166 = vld [vmem:[#allocation5 + $0xa8] sm:$0xff]
    %v167 = vld [vmem:[#allocation5 + $0xb0] sm:$0xff]
    %v168 = vld [vmem:[#allocation5 + $0xb8] sm:$0xff]
    %v169 = vld [vmem:[#allocation5 + $0xc0] sm:$0xff]
    %v170 = vld [vmem:[#allocation5 + $0xc8] sm:$0xff]
    %v171 = vld [vmem:[#allocation5 + $0xd0] sm:$0xff]
    %v172 = vld [vmem:[#allocation5 + $0xd8] sm:$0xff]
    %v173 = vld [vmem:[#allocation5 + $0xe0] sm:$0xff]
    %v174 = vld [vmem:[#allocation5 + $0xe8] sm:$0xff]
    %v175 = vld [vmem:[#allocation5 + $0xf0] sm:$0xff]
    %v176 = vld [vmem:[#allocation5 + $0xf8] sm:$0xff]
    %v177 = vld [vmem:[#allocation5 + $0x100] sm:$0xff]
    %v178 = vld [vmem:[#allocation5 + $0x108] sm:$0xff]
    %v179 = vlaneseq
    %v180 = vshrl.u32 %v179, 7
    %v181 = vsub.s32 1, %v180
    %v182 = vrot.slane %v57, %v181
    %v183 = vlaneseq
    %v184 = vshrl.u32 %v183, 7
    %v185 = vsub.s32 5, %v184
    %v186 = vrot.slane %v57, %v185
    %v189 = vlaneseq
    %v190 = vshrl.u32 %v189, 7
    %v191 = vsub.s32 1, %v190
    %v192 = vrot.slane %v182, %v191
    %v193 = vlaneseq
    %v194 = vshrl.u32 %v193, 7
    %v195 = vsub.s32 1, %v194
    %v196 = vrot.slane %v186, %v195
    %v229 = vunpack.c.l.b16 %v147
    %v230 = vunpack.c.h.b16 %v147
    %v231 = vunpack.c.l.b16 %v148
    %v232 = vunpack.c.h.b16 %v148
    %v233 = vunpack.c.l.b16 %v149
    %v234 = vunpack.c.h.b16 %v149
    %v235 = vunpack.c.l.b16 %v150
    %v236 = vunpack.c.h.b16 %v150
    %v237 = vunpack.c.l.b16 %v151
    %v238 = vunpack.c.h.b16 %v151
    %v239 = vunpack.c.l.b16 %v152
    %v240 = vunpack.c.h.b16 %v152
    %v241 = vunpack.c.l.b16 %v153
    %v242 = vunpack.c.h.b16 %v153
    %v243 = vunpack.c.l.b16 %v154
    %v244 = vunpack.c.h.b16 %v154
    %v245 = vunpack.c.l.b16 %v155
    %v246 = vunpack.c.h.b16 %v155
    %v247 = vunpack.c.l.b16 %v156
    %v248 = vunpack.c.h.b16 %v156
    %v249 = vunpack.c.l.b16 %v157
    %v250 = vunpack.c.h.b16 %v157
    %v251 = vunpack.c.l.b16 %v158
    %v252 = vunpack.c.h.b16 %v158
    %v253 = vunpack.c.l.b16 %v159
    %v254 = vunpack.c.h.b16 %v159
    %v255 = vunpack.c.l.b16 %v160
    %v256 = vunpack.c.h.b16 %v160
    %v257 = vunpack.c.l.b16 %v161
    %v258 = vunpack.c.h.b16 %v161
    %v259 = vunpack.c.l.b16 %v162
    %v260 = vunpack.c.h.b16 %v162
    %v261 = vunpack.c.l.b16 %v163
    %v262 = vunpack.c.h.b16 %v163
    %v263 = vunpack.c.l.b16 %v164
    %v264 = vunpack.c.h.b16 %v164
    %v265 = vunpack.c.l.b16 %v165
    %v266 = vunpack.c.h.b16 %v165
    %v267 = vunpack.c.l.b16 %v166
    %v268 = vunpack.c.h.b16 %v166
    %v269 = vunpack.c.l.b16 %v167
    %v270 = vunpack.c.h.b16 %v167
    %v271 = vunpack.c.l.b16 %v168
    %v272 = vunpack.c.h.b16 %v168
    %v273 = vunpack.c.l.b16 %v169
    %v274 = vunpack.c.h.b16 %v169
    %v275 = vunpack.c.l.b16 %v170
    %v276 = vunpack.c.h.b16 %v170
    %v277 = vunpack.c.l.b16 %v171
    %v278 = vunpack.c.h.b16 %v171
    %v279 = vunpack.c.l.b16 %v172
    %v280 = vunpack.c.h.b16 %v172
    %v281 = vunpack.c.l.b16 %v173
    %v282 = vunpack.c.h.b16 %v173
    %v283 = vunpack.c.l.b16 %v174
    %v284 = vunpack.c.h.b16 %v174
    %v285 = vunpack.c.l.b16 %v175
    %v286 = vunpack.c.h.b16 %v175
    %v287 = vunpack.c.l.b16 %v176
    %v288 = vunpack.c.h.b16 %v176
    %v289 = vunpack.c.l.b16 %v177
    %v290 = vunpack.c.h.b16 %v177
    %v291 = vunpack.c.l.b16 %v178
    %v292 = vunpack.c.h.b16 %v178
    %v293 = vpack.c.b16 %v231, %v229
    %v294 = vpack.c.b16 %v232, %v230
    %v295 = vpack.c.b16 %v235, %v233
    %v296 = vpack.c.b16 %v236, %v234
    %v297 = vpack.c.b16 %v239, %v237
    %v298 = vpack.c.b16 %v240, %v238
    %v299 = vpack.c.b16 %v243, %v241
    %v300 = vpack.c.b16 %v244, %v242
    %v301 = vpack.c.b16 %v247, %v245
    %v302 = vpack.c.b16 %v248, %v246
    %v303 = vpack.c.b16 %v251, %v249
    %v304 = vpack.c.b16 %v252, %v250
    %v305 = vpack.c.b16 %v255, %v253
    %v306 = vpack.c.b16 %v256, %v254
    %v307 = vpack.c.b16 %v259, %v257
    %v308 = vpack.c.b16 %v260, %v258
    %v309 = vpack.c.b16 %v263, %v261
    %v310 = vpack.c.b16 %v264, %v262
    %v311 = vpack.c.b16 %v267, %v265
    %v312 = vpack.c.b16 %v268, %v266
    %v313 = vpack.c.b16 %v271, %v269
    %v314 = vpack.c.b16 %v272, %v270
    %v315 = vpack.c.b16 %v275, %v273
    %v316 = vpack.c.b16 %v276, %v274
    %v317 = vpack.c.b16 %v279, %v277
    %v318 = vpack.c.b16 %v280, %v278
    %v319 = vpack.c.b16 %v283, %v281
    %v320 = vpack.c.b16 %v284, %v282
    %v321 = vpack.c.b16 %v287, %v285
    %v322 = vpack.c.b16 %v288, %v286
    %v323 = vpack.c.b16 %v291, %v289
    %v324 = vpack.c.b16 %v292, %v290
    %357 = vmatprep.subr.bf16.mxu0 %v308
    %358 = vmatpush1.bf16.msra.mxu0 %v307
    %359 = vmatprep.subr.bf16.mxu0 %v306
    %360 = vmatpush1.bf16.msra.mxu0 %v305
    %361 = vmatprep.subr.bf16.mxu0 %v304
    %362 = vmatpush1.bf16.msra.mxu0 %v303
    %363 = vmatprep.subr.bf16.mxu0 %v302
    %364 = vmatpush1.bf16.msra.mxu0 %v301
    %365 = vmatprep.subr.bf16.mxu0 %v300
    %366 = vmatpush1.bf16.msra.mxu0 %v299
    %367 = vmatprep.subr.bf16.mxu0 %v298
    %368 = vmatpush1.bf16.msra.mxu0 %v297
    %369 = vmatprep.subr.bf16.mxu0 %v296
    %370 = vmatpush1.bf16.msra.mxu0 %v295
    %371 = vmatprep.subr.bf16.mxu0 %v294
    %372 = vmatpush1.bf16.msra.mxu0 %v293
    %373 = vmatprep.subr.bf16.mxu0 %v324
    %374 = vmatpush2.bf16.msra.mxu0 %v323
    %375 = vmatprep.subr.bf16.mxu0 %v322
    %376 = vmatpush2.bf16.msra.mxu0 %v321
    %377 = vmatprep.subr.bf16.mxu0 %v320
    %378 = vmatpush2.bf16.msra.mxu0 %v319
    %379 = vmatprep.subr.bf16.mxu0 %v318
    %380 = vmatpush2.bf16.msra.mxu0 %v317
    %381 = vmatprep.subr.bf16.mxu0 %v316
    %382 = vmatpush2.bf16.msra.mxu0 %v315
    %383 = vmatprep.subr.bf16.mxu0 %v314
    %384 = vmatpush2.bf16.msra.mxu0 %v313
    %385 = vmatprep.subr.bf16.mxu0 %v312
    %386 = vmatpush2.bf16.msra.mxu0 %v311
    %387 = vmatprep.subr.bf16.mxu0 %v310
    %388 = vmatpush2.bf16.msra.mxu0 %v309
    %389 = vmatprep.mubr.bf16.mxu0 %v146
    %390 = vmatmul.mubr.bf16.gmra.mxu0 %v145
    %v391 = vpop.f32.mrf.mxu0
    %v392 = vadd.f32 %v192, %v391
    %v393 = vpop.f32.mrf.mxu0
    %v394 = vadd.f32 %v196, %v393
    %v395 = vpop.f32.mrf.mxu0
    %v396 = vadd.f32 %v192, %v395
    %v397 = vpop.f32.mrf.mxu0
    %v398 = vadd.f32 %v196, %v397
    %399 = vdwg.mxu0
    %v400 = vmax.f32 %v392, 0.0
    %v401 = vmax.f32 %v394, 0.0
    %v402 = vmax.f32 %v396, 0.0
    %v403 = vmax.f32 %v398, 0.0
    %v404 = vpack.c.bf16 %v402, %v400
    %v405 = vpack.c.bf16 %v403, %v401
    %v406 = vld [vmem:[#allocation5 + $0x110] sm:$0xff]
    %v407 = vld [vmem:[#allocation5 + $0x118] sm:$0xff]
    %v408 = vld [vmem:[#allocation5 + $0x120] sm:$0xff]
    %v409 = vld [vmem:[#allocation5 + $0x128] sm:$0xff]
    %v410 = vld [vmem:[#allocation5 + $0x130] sm:$0xff]
    %v411 = vld [vmem:[#allocation5 + $0x138] sm:$0xff]
    %v412 = vld [vmem:[#allocation5 + $0x140] sm:$0xff]
    %v413 = vld [vmem:[#allocation5 + $0x148] sm:$0xff]
    %v414 = vld [vmem:[#allocation5 + $0x150] sm:$0xff]
    %v415 = vld [vmem:[#allocation5 + $0x158] sm:$0xff]
    %v416 = vld [vmem:[#allocation5 + $0x160] sm:$0xff]
    %v417 = vld [vmem:[#allocation5 + $0x168] sm:$0xff]
    %v418 = vld [vmem:[#allocation5 + $0x170] sm:$0xff]
    %v419 = vld [vmem:[#allocation5 + $0x178] sm:$0xff]
    %v420 = vld [vmem:[#allocation5 + $0x180] sm:$0xff]
    %v421 = vld [vmem:[#allocation5 + $0x188] sm:$0xff]
    %v422 = vld [vmem:[#allocation5 + $0x190] sm:$0xff]
    %v423 = vld [vmem:[#allocation5 + $0x198] sm:$0xff]
    %v424 = vld [vmem:[#allocation5 + $0x1a0] sm:$0xff]
    %v425 = vld [vmem:[#allocation5 + $0x1a8] sm:$0xff]
    %v426 = vld [vmem:[#allocation5 + $0x1b0] sm:$0xff]
    %v427 = vld [vmem:[#allocation5 + $0x1b8] sm:$0xff]
    %v428 = vld [vmem:[#allocation5 + $0x1c0] sm:$0xff]
    %v429 = vld [vmem:[#allocation5 + $0x1c8] sm:$0xff]
    %v430 = vld [vmem:[#allocation5 + $0x1d0] sm:$0xff]
    %v431 = vld [vmem:[#allocation5 + $0x1d8] sm:$0xff]
    %v432 = vld [vmem:[#allocation5 + $0x1e0] sm:$0xff]
    %v433 = vld [vmem:[#allocation5 + $0x1e8] sm:$0xff]
    %v434 = vld [vmem:[#allocation5 + $0x1f0] sm:$0xff]
    %v435 = vld [vmem:[#allocation5 + $0x1f8] sm:$0xff]
    %v436 = vld [vmem:[#allocation5 + $0x200] sm:$0xff]
    %v437 = vld [vmem:[#allocation5 + $0x208] sm:$0xff]
    %v438 = vlaneseq
    %v439 = vshrl.u32 %v438, 7
    %v440 = vsub.s32 2, %v439
    %v441 = vrot.slane %v57, %v440
    %v442 = vlaneseq
    %v443 = vshrl.u32 %v442, 7
    %v444 = vsub.s32 6, %v443
    %v445 = vrot.slane %v57, %v444
    %v448 = vlaneseq
    %v449 = vshrl.u32 %v448, 7
    %v450 = vsub.s32 2, %v449
    %v451 = vrot.slane %v441, %v450
    %v452 = vlaneseq
    %v453 = vshrl.u32 %v452, 7
    %v454 = vsub.s32 2, %v453
    %v455 = vrot.slane %v445, %v454
    %v488 = vunpack.c.l.b16 %v406
    %v489 = vunpack.c.h.b16 %v406
    %v490 = vunpack.c.l.b16 %v407
    %v491 = vunpack.c.h.b16 %v407
    %v492 = vunpack.c.l.b16 %v408
    %v493 = vunpack.c.h.b16 %v408
    %v494 = vunpack.c.l.b16 %v409
    %v495 = vunpack.c.h.b16 %v409
    %v496 = vunpack.c.l.b16 %v410
    %v497 = vunpack.c.h.b16 %v410
    %v498 = vunpack.c.l.b16 %v411
    %v499 = vunpack.c.h.b16 %v411
    %v500 = vunpack.c.l.b16 %v412
    %v501 = vunpack.c.h.b16 %v412
    %v502 = vunpack.c.l.b16 %v413
    %v503 = vunpack.c.h.b16 %v413
    %v504 = vunpack.c.l.b16 %v414
    %v505 = vunpack.c.h.b16 %v414
    %v506 = vunpack.c.l.b16 %v415
    %v507 = vunpack.c.h.b16 %v415
    %v508 = vunpack.c.l.b16 %v416
    %v509 = vunpack.c.h.b16 %v416
    %v510 = vunpack.c.l.b16 %v417
    %v511 = vunpack.c.h.b16 %v417
    %v512 = vunpack.c.l.b16 %v418
    %v513 = vunpack.c.h.b16 %v418
    %v514 = vunpack.c.l.b16 %v419
    %v515 = vunpack.c.h.b16 %v419
    %v516 = vunpack.c.l.b16 %v420
    %v517 = vunpack.c.h.b16 %v420
    %v518 = vunpack.c.l.b16 %v421
    %v519 = vunpack.c.h.b16 %v421
    %v520 = vunpack.c.l.b16 %v422
    %v521 = vunpack.c.h.b16 %v422
    %v522 = vunpack.c.l.b16 %v423
    %v523 = vunpack.c.h.b16 %v423
    %v524 = vunpack.c.l.b16 %v424
    %v525 = vunpack.c.h.b16 %v424
    %v526 = vunpack.c.l.b16 %v425
    %v527 = vunpack.c.h.b16 %v425
    %v528 = vunpack.c.l.b16 %v426
    %v529 = vunpack.c.h.b16 %v426
    %v530 = vunpack.c.l.b16 %v427
    %v531 = vunpack.c.h.b16 %v427
    %v532 = vunpack.c.l.b16 %v428
    %v533 = vunpack.c.h.b16 %v428
    %v534 = vunpack.c.l.b16 %v429
    %v535 = vunpack.c.h.b16 %v429
    %v536 = vunpack.c.l.b16 %v430
    %v537 = vunpack.c.h.b16 %v430
    %v538 = vunpack.c.l.b16 %v431
    %v539 = vunpack.c.h.b16 %v431
    %v540 = vunpack.c.l.b16 %v432
    %v541 = vunpack.c.h.b16 %v432
    %v542 = vunpack.c.l.b16 %v433
    %v543 = vunpack.c.h.b16 %v433
    %v544 = vunpack.c.l.b16 %v434
    %v545 = vunpack.c.h.b16 %v434
    %v546 = vunpack.c.l.b16 %v435
    %v547 = vunpack.c.h.b16 %v435
    %v548 = vunpack.c.l.b16 %v436
    %v549 = vunpack.c.h.b16 %v436
    %v550 = vunpack.c.l.b16 %v437
    %v551 = vunpack.c.h.b16 %v437
    %v552 = vpack.c.b16 %v490, %v488
    %v553 = vpack.c.b16 %v491, %v489
    %v554 = vpack.c.b16 %v494, %v492
    %v555 = vpack.c.b16 %v495, %v493
    %v556 = vpack.c.b16 %v498, %v496
    %v557 = vpack.c.b16 %v499, %v497
    %v558 = vpack.c.b16 %v502, %v500
    %v559 = vpack.c.b16 %v503, %v501
    %v560 = vpack.c.b16 %v506, %v504
    %v561 = vpack.c.b16 %v507, %v505
    %v562 = vpack.c.b16 %v510, %v508
    %v563 = vpack.c.b16 %v511, %v509
    %v564 = vpack.c.b16 %v514, %v512
    %v565 = vpack.c.b16 %v515, %v513
    %v566 = vpack.c.b16 %v518, %v516
    %v567 = vpack.c.b16 %v519, %v517
    %v568 = vpack.c.b16 %v522, %v520
    %v569 = vpack.c.b16 %v523, %v521
    %v570 = vpack.c.b16 %v526, %v524
    %v571 = vpack.c.b16 %v527, %v525
    %v572 = vpack.c.b16 %v530, %v528
    %v573 = vpack.c.b16 %v531, %v529
    %v574 = vpack.c.b16 %v534, %v532
    %v575 = vpack.c.b16 %v535, %v533
    %v576 = vpack.c.b16 %v538, %v536
    %v577 = vpack.c.b16 %v539, %v537
    %v578 = vpack.c.b16 %v542, %v540
    %v579 = vpack.c.b16 %v543, %v541
    %v580 = vpack.c.b16 %v546, %v544
    %v581 = vpack.c.b16 %v547, %v545
    %v582 = vpack.c.b16 %v550, %v548
    %v583 = vpack.c.b16 %v551, %v549
    %616 = vmatprep.subr.bf16.mxu0 %v567
    %617 = vmatpush1.bf16.msra.mxu0 %v566
    %618 = vmatprep.subr.bf16.mxu0 %v565
    %619 = vmatpush1.bf16.msra.mxu0 %v564
    %620 = vmatprep.subr.bf16.mxu0 %v563
    %621 = vmatpush1.bf16.msra.mxu0 %v562
    %622 = vmatprep.subr.bf16.mxu0 %v561
    %623 = vmatpush1.bf16.msra.mxu0 %v560
    %624 = vmatprep.subr.bf16.mxu0 %v559
    %625 = vmatpush1.bf16.msra.mxu0 %v558
    %626 = vmatprep.subr.bf16.mxu0 %v557
    %627 = vmatpush1.bf16.msra.mxu0 %v556
    %628 = vmatprep.subr.bf16.mxu0 %v555
    %629 = vmatpush1.bf16.msra.mxu0 %v554
    %630 = vmatprep.subr.bf16.mxu0 %v553
    %631 = vmatpush1.bf16.msra.mxu0 %v552
    %632 = vmatprep.subr.bf16.mxu0 %v583
    %633 = vmatpush2.bf16.msra.mxu0 %v582
    %634 = vmatprep.subr.bf16.mxu0 %v581
    %635 = vmatpush2.bf16.msra.mxu0 %v580
    %636 = vmatprep.subr.bf16.mxu0 %v579
    %637 = vmatpush2.bf16.msra.mxu0 %v578
    %638 = vmatprep.subr.bf16.mxu0 %v577
    %639 = vmatpush2.bf16.msra.mxu0 %v576
    %640 = vmatprep.subr.bf16.mxu0 %v575
    %641 = vmatpush2.bf16.msra.mxu0 %v574
    %642 = vmatprep.subr.bf16.mxu0 %v573
    %643 = vmatpush2.bf16.msra.mxu0 %v572
    %644 = vmatprep.subr.bf16.mxu0 %v571
    %645 = vmatpush2.bf16.msra.mxu0 %v570
    %646 = vmatprep.subr.bf16.mxu0 %v569
    %647 = vmatpush2.bf16.msra.mxu0 %v568
    %648 = vmatprep.mubr.bf16.mxu0 %v405
    %649 = vmatmul.mubr.bf16.gmra.mxu0 %v404
    %v650 = vpop.f32.mrf.mxu0
    %v651 = vadd.f32 %v451, %v650
    %v652 = vpop.f32.mrf.mxu0
    %v653 = vadd.f32 %v455, %v652
    %v654 = vpop.f32.mrf.mxu0
    %v655 = vadd.f32 %v451, %v654
    %v656 = vpop.f32.mrf.mxu0
    %v657 = vadd.f32 %v455, %v656
    %658 = vdwg.mxu0
    %v659 = vmax.f32 %v651, 0.0
    %v660 = vmax.f32 %v653, 0.0
    %v661 = vmax.f32 %v655, 0.0
    %v662 = vmax.f32 %v657, 0.0
    %v663 = vpack.c.bf16 %v661, %v659
    %v664 = vpack.c.bf16 %v662, %v660
    %v665 = vld [vmem:[#allocation5 + $0x210] sm:$0xf]
    %v666 = vld [vmem:[#allocation5 + $0x218] sm:$0xf]
    %v667 = vld [vmem:[#allocation5 + $0x220] sm:$0xf]
    %v668 = vld [vmem:[#allocation5 + $0x228] sm:$0xf]
    %v669 = vld [vmem:[#allocation5 + $0x230] sm:$0xf]
    %v670 = vld [vmem:[#allocation5 + $0x238] sm:$0xf]
    %v671 = vld [vmem:[#allocation5 + $0x240] sm:$0xf]
    %v672 = vld [vmem:[#allocation5 + $0x248] sm:$0xf]
    %v673 = vld [vmem:[#allocation5 + $0x250] sm:$0xf]
    %v674 = vld [vmem:[#allocation5 + $0x258] sm:$0xf]
    %v675 = vld [vmem:[#allocation5 + $0x260] sm:$0xf]
    %v676 = vld [vmem:[#allocation5 + $0x268] sm:$0xf]
    %v677 = vld [vmem:[#allocation5 + $0x270] sm:$0xf]
    %v678 = vld [vmem:[#allocation5 + $0x278] sm:$0xf]
    %v679 = vld [vmem:[#allocation5 + $0x280] sm:$0xf]
    %v680 = vld [vmem:[#allocation5 + $0x288] sm:$0xf]
    %v681 = vld [vmem:[#allocation5 + $0x290] sm:$0xf]
    %v682 = vld [vmem:[#allocation5 + $0x298] sm:$0xf]
    %v683 = vld [vmem:[#allocation5 + $0x2a0] sm:$0xf]
    %v684 = vld [vmem:[#allocation5 + $0x2a8] sm:$0xf]
    %v685 = vld [vmem:[#allocation5 + $0x2b0] sm:$0xf]
    %v686 = vld [vmem:[#allocation5 + $0x2b8] sm:$0xf]
    %v687 = vld [vmem:[#allocation5 + $0x2c0] sm:$0xf]
    %v688 = vld [vmem:[#allocation5 + $0x2c8] sm:$0xf]
    %v689 = vld [vmem:[#allocation5 + $0x2d0] sm:$0xf]
    %v690 = vld [vmem:[#allocation5 + $0x2d8] sm:$0xf]
    %v691 = vld [vmem:[#allocation5 + $0x2e0] sm:$0xf]
    %v692 = vld [vmem:[#allocation5 + $0x2e8] sm:$0xf]
    %v693 = vld [vmem:[#allocation5 + $0x2f0] sm:$0xf]
    %v694 = vld [vmem:[#allocation5 + $0x2f8] sm:$0xf]
    %v695 = vld [vmem:[#allocation5 + $0x300] sm:$0xf]
    %v696 = vld [vmem:[#allocation5 + $0x308] sm:$0xf]
    %v697 = vlaneseq
    %v698 = vshrl.u32 %v697, 7
    %v699 = vsub.s32 3, %v698
    %v700 = vrot.slane %v57, %v699
    %v733 = vunpack.c.l.b16 %v665
    %v734 = vunpack.c.l.b16 %v666
    %v735 = vunpack.c.l.b16 %v667
    %v736 = vunpack.c.l.b16 %v668
    %v737 = vunpack.c.l.b16 %v669
    %v738 = vunpack.c.l.b16 %v670
    %v739 = vunpack.c.l.b16 %v671
    %v740 = vunpack.c.l.b16 %v672
    %v741 = vunpack.c.l.b16 %v673
    %v742 = vunpack.c.l.b16 %v674
    %v743 = vunpack.c.l.b16 %v675
    %v744 = vunpack.c.l.b16 %v676
    %v745 = vunpack.c.l.b16 %v677
    %v746 = vunpack.c.l.b16 %v678
    %v747 = vunpack.c.l.b16 %v679
    %v748 = vunpack.c.l.b16 %v680
    %v749 = vunpack.c.l.b16 %v681
    %v750 = vunpack.c.l.b16 %v682
    %v751 = vunpack.c.l.b16 %v683
    %v752 = vunpack.c.l.b16 %v684
    %v753 = vunpack.c.l.b16 %v685
    %v754 = vunpack.c.l.b16 %v686
    %v755 = vunpack.c.l.b16 %v687
    %v756 = vunpack.c.l.b16 %v688
    %v757 = vunpack.c.l.b16 %v689
    %v758 = vunpack.c.l.b16 %v690
    %v759 = vunpack.c.l.b16 %v691
    %v760 = vunpack.c.l.b16 %v692
    %v761 = vunpack.c.l.b16 %v693
    %v762 = vunpack.c.l.b16 %v694
    %v763 = vunpack.c.l.b16 %v695
    %v764 = vunpack.c.l.b16 %v696
    %v765 = vpack.c.b16 %v734, %v733
    %v766 = vpack.c.b16 %v736, %v735
    %v767 = vpack.c.b16 %v738, %v737
    %v768 = vpack.c.b16 %v740, %v739
    %v769 = vpack.c.b16 %v742, %v741
    %v770 = vpack.c.b16 %v744, %v743
    %v771 = vpack.c.b16 %v746, %v745
    %v772 = vpack.c.b16 %v748, %v747
    %v773 = vpack.c.b16 %v750, %v749
    %v774 = vpack.c.b16 %v752, %v751
    %v775 = vpack.c.b16 %v754, %v753
    %v776 = vpack.c.b16 %v756, %v755
    %v777 = vpack.c.b16 %v758, %v757
    %v778 = vpack.c.b16 %v760, %v759
    %v779 = vpack.c.b16 %v762, %v761
    %v780 = vpack.c.b16 %v764, %v763
    %797 = vmatprep.subr.bf16.mxu0 0
    %798 = vmatpush1.bf16.msra.mxu0 %v772
    %799 = vmatprep.subr.bf16.mxu0 0
    %800 = vmatpush1.bf16.msra.mxu0 %v771
    %801 = vmatprep.subr.bf16.mxu0 0
    %802 = vmatpush1.bf16.msra.mxu0 %v770
    %803 = vmatprep.subr.bf16.mxu0 0
    %804 = vmatpush1.bf16.msra.mxu0 %v769
    %805 = vmatprep.subr.bf16.mxu0 0
    %806 = vmatpush1.bf16.msra.mxu0 %v768
    %807 = vmatprep.subr.bf16.mxu0 0
    %808 = vmatpush1.bf16.msra.mxu0 %v767
    %809 = vmatprep.subr.bf16.mxu0 0
    %810 = vmatpush1.bf16.msra.mxu0 %v766
    %811 = vmatprep.subr.bf16.mxu0 0
    %812 = vmatpush1.bf16.msra.mxu0 %v765
    %813 = vmatprep.subr.bf16.mxu0 0
    %814 = vmatpush2.bf16.msra.mxu0 %v780
    %815 = vmatprep.subr.bf16.mxu0 0
    %816 = vmatpush2.bf16.msra.mxu0 %v779
    %817 = vmatprep.subr.bf16.mxu0 0
    %818 = vmatpush2.bf16.msra.mxu0 %v778
    %819 = vmatprep.subr.bf16.mxu0 0
    %820 = vmatpush2.bf16.msra.mxu0 %v777
    %821 = vmatprep.subr.bf16.mxu0 0
    %822 = vmatpush2.bf16.msra.mxu0 %v776
    %823 = vmatprep.subr.bf16.mxu0 0
    %824 = vmatpush2.bf16.msra.mxu0 %v775
    %825 = vmatprep.subr.bf16.mxu0 0
    %826 = vmatpush2.bf16.msra.mxu0 %v774
    %827 = vmatprep.subr.bf16.mxu0 0
    %828 = vmatpush2.bf16.msra.mxu0 %v773
    %829 = vmatprep.mubr.bf16.mxu0 %v664
    %830 = vmatmul.mubr.bf16.gmra.mxu0 %v663
    %v831 = vpop.f32.mrf.mxu0
    %v832 = vadd.f32 %v700, %v831
    %v833 = vpop.f32.mrf.mxu0
    %v834 = vpop.f32.mrf.mxu0
    %v835 = vadd.f32 %v700, %v834
    %v836 = vpop.f32.mrf.mxu0
    %837 = vdwg.mxu0
    %v838 = vtanh.pop %v832
    %v839 = vtanh.pop %v835
    %840 = vst [vmem:[#allocation8] sm:$0xff] %v838
    %841 = vst [vmem:[#allocation8 + $0x8] sm:$0xff] %v839
    // Predicated region
    $region26: #{tpu_custom_call.1} parent=1 // pred_check
      _
    $region27: #{tpu_custom_call.1} parent=1 // pred_check_branch
      %843 = sbr.rel (0) target = $region29
    $region28: #{tpu_custom_call.1} parent=1 // pred_region
      %s845 = ssub.s32 256, 256
      %846 = vsyncadd [#allocation4], %s845
      %s847 = sshll.u32 [#allocation8], 4
      %s848 = int_to_ptr.vmem [resolvable:$true] %s847
      %853 = dma.vmem_to_hbm [thread:$0]  %s848, 256, %s3, [#allocation4], 128, 128, 8
    $region29: #{tpu_custom_call.1} parent=1 // pred_fallthru
      _
    // Predicated region
    $region30: #{tpu_custom_call.1} parent=1 // pred_check
      _
    $region31: #{tpu_custom_call.1} parent=1 // pred_check_branch
      %855 = sbr.rel (0) target = $region33
    $region32: #{tpu_custom_call.1} parent=1 // pred_region
      %856 = dma.done [#allocation4], 256
    $region33: #{tpu_custom_call.1} parent=1 // pred_fallthru
      _
    %857 = vsyncpa [#allocation3], 1
    %858 = vsyncpa [#allocation6], 1
    %859 = vsyncpa [#allocation4], 1

</llo_original>
